<compile_context>
chip_gen: v5e
topology: v5e:2x2
jax: 0.10.0
libtpu: 0.0.40
codegen_flags: <defaults>
</compile_context>

<pallas_src>
import jax
import jax.numpy as jnp
from jax import lax
from jax.experimental import pallas as pl
from jax.experimental.pallas import tpu as pltpu

LANE = 128


def _linear_kernel(x_ref, w_ref, b_ref, o_ref):
    # x_ref: (B, K) f32, w_ref: (N_pad, K) f32, b_ref: (1, N_pad) f32
    # Contract on K (axis 1 of both operands): (B, K) x (N_pad, K) -> (B, N_pad)
    acc = lax.dot_general(
        x_ref[...], w_ref[...],
        dimension_numbers=(((1,), (1,)), ((), ())),
        preferred_element_type=jnp.float32,
    )
    o_ref[...] = acc + b_ref[...]


def prepare_params(weight, bias):
    """One-time (init-time) param prep: cast to f32 and zero-pad N up to a
    multiple of 128 so the kernel's N axis is lane-dense."""
    n, k = weight.shape
    n_pad = ((n + LANE - 1) // LANE) * LANE
    w_p = jnp.zeros((n_pad, k), jnp.float32).at[:n, :].set(weight.astype(jnp.float32))
    b_p = jnp.zeros((1, n_pad), jnp.float32).at[0, :n].set(bias.astype(jnp.float32))
    return w_p, b_p, n


def baseline_a_forward(x, w_padded, b_padded, output_dim):
    """x: (batch, ...) -> flattened to (batch, input_dim).
    w_padded: (N_pad, K) f32, b_padded: (1, N_pad) f32 from prepare_params."""
    batch = x.shape[0]
    x2d = x.reshape(batch, -1)
    if x2d.dtype != jnp.float32:
        x2d = x2d.astype(jnp.float32)
    k = x2d.shape[1]
    n_pad = w_padded.shape[0]

    cost = pl.CostEstimate(
        flops=2 * batch * k * n_pad,
        transcendentals=0,
        bytes_accessed=(batch * k + n_pad * k + batch * n_pad + n_pad) * 4,
    )

    # Problem is tiny (fits a single VMEM block), so a single grid step with
    # whole-array blocks is the right structure; the win is layout plumbing.
    # TODO(synk): for large (M, N, K) switch to a 3-D grid with an f32 VMEM
    # accumulator, pl.when init/finalize on K, and ("parallel","parallel",
    # "arbitrary") dimension_semantics.
    out_padded = pl.pallas_call(
        _linear_kernel,
        out_shape=jax.ShapeDtypeStruct((batch, n_pad), jnp.float32),
        grid_spec=pltpu.PrefetchScalarGridSpec(
            num_scalar_prefetch=0,
            grid=(1,),
            in_specs=[
                pl.BlockSpec((batch, k), lambda i: (0, 0)),
                pl.BlockSpec((n_pad, k), lambda i: (0, 0)),
                pl.BlockSpec((1, n_pad), lambda i: (0, 0)),
            ],
            out_specs=pl.BlockSpec((batch, n_pad), lambda i: (0, 0)),
        ),
        compiler_params=pltpu.CompilerParams(
            dimension_semantics=("arbitrary",)),
        cost_estimate=cost,
    )(x2d, w_padded, b_padded)

    return out_padded[:, :output_dim]


def init_params(key, input_dim=784, output_dim=10):
    # Deterministic init mirroring nn.Linear's default uniform(-1/sqrt(in), 1/sqrt(in)).
    kw, kb = jax.random.split(key)
    bound = 1.0 / jnp.sqrt(jnp.float32(input_dim))
    weight = jax.random.uniform(kw, (output_dim, input_dim), jnp.float32,
                                minval=-bound, maxval=bound)
    bias = jax.random.uniform(kb, (output_dim,), jnp.float32,
                              minval=-bound, maxval=bound)
    return weight, bias


if __name__ == "__main__":
    key = jax.random.PRNGKey(0)
    kx, kp = jax.random.split(key)

    input_dim, output_dim, batch = 784, 10, 2
    # Input shaped like MNIST images; forward flattens it (x.view(B, -1)).
    x = jax.random.normal(kx, (batch, 1, 28, 28), jnp.float32)
    weight, bias = init_params(kp, input_dim, output_dim)

    # One-time param prep (cast + lane-dense padding) outside the hot path.
    w_padded, b_padded, _ = prepare_params(weight, bias)

    out = baseline_a_forward(x, w_padded, b_padded, output_dim)
    out = jax.block_until_ready(out)

    # Reference check in plain JAX.
    ref = x.reshape(batch, -1) @ weight.T + bias
    assert out.shape == (batch, output_dim)
    assert jnp.allclose(out, ref, atol=1e-4, rtol=1e-4)
    print("KERNEL_OK")
</pallas_src>

<mosaic_0001>
module attributes {stable_mosaic.version = 11 : i64} {
  func.func @_linear_kernel(%arg0: i32, %arg1: memref<2x784xf32, #tpu.memory_space<vmem>>, %arg2: memref<128x784xf32, #tpu.memory_space<vmem>>, %arg3: memref<1x128xf32, #tpu.memory_space<vmem>>, %arg4: memref<2x128xf32, #tpu.memory_space<vmem>>) attributes {dimension_semantics = [#tpu.dimension_semantics<arbitrary>], iteration_bounds = array<i64: 1>, scalar_prefetch = 0 : i64, scratch_operands = 0 : i64, tpu.core_type = #tpu.core_type<tc>, window_params = [{pipeline_mode = #tpu.pipeline_mode<synchronous>, transform_indices = @transform_0, window_bounds = array<i64: 2, 784>}, {pipeline_mode = #tpu.pipeline_mode<synchronous>, transform_indices = @transform_1, window_bounds = array<i64: 128, 784>}, {pipeline_mode = #tpu.pipeline_mode<synchronous>, transform_indices = @transform_2, window_bounds = array<i64: 1, 128>}, {pipeline_mode = #tpu.pipeline_mode<synchronous>, transform_indices = @transform_3, window_bounds = array<i64: 2, 128>}]} {
    %c0 = arith.constant 0 : index
    %c0_0 = arith.constant 0 : index
    %0 = vector.load %arg1[%c0, %c0_0] : memref<2x784xf32, #tpu.memory_space<vmem>>, vector<2x784xf32>
    %c0_1 = arith.constant 0 : index
    %c0_2 = arith.constant 0 : index
    %1 = vector.load %arg2[%c0_1, %c0_2] : memref<128x784xf32, #tpu.memory_space<vmem>>, vector<128x784xf32>
    %cst = arith.constant dense<0.000000e+00> : vector<2x128xf32>
    %2 = tpu.matmul %0, %1, %cst {dimension_numbers = #tpu.dot_dimension_numbers<[1], [1], [0], [0], [0, 0, 1, 0], [], []>} : vector<2x784xf32>, vector<128x784xf32>, vector<2x128xf32> -> vector<2x128xf32>
    %c0_3 = arith.constant 0 : index
    %c0_4 = arith.constant 0 : index
    %3 = vector.load %arg3[%c0_3, %c0_4] : memref<1x128xf32, #tpu.memory_space<vmem>>, vector<1x128xf32>
    %4 = vector.broadcast %3 : vector<1x128xf32> to vector<2x128xf32>
    %5 = arith.addf %2, %4 : vector<2x128xf32>
    %c0_5 = arith.constant 0 : index
    %c0_6 = arith.constant 0 : index
    %6 = vector.load %arg4[%c0_5, %c0_6] : memref<2x128xf32, #tpu.memory_space<vmem>>, vector<2x128xf32>
    tpu.vector_store %arg4[%c0_5, %c0_6], %5 {strides = array<i32>} : memref<2x128xf32, #tpu.memory_space<vmem>>, vector<2x128xf32>,
    return
  }
  func.func @transform_0(%arg0: i32) -> (i32, i32) {
    %c0_i32 = arith.constant 0 : i32
    %c0_i32_0 = arith.constant 0 : i32
    %c0_i32_1 = arith.constant 0 : i32
    return %c0_i32, %c0_i32_0 : i32, i32
  }
  func.func @transform_1(%arg0: i32) -> (i32, i32) {
    %c0_i32 = arith.constant 0 : i32
    %c0_i32_0 = arith.constant 0 : i32
    %c0_i32_1 = arith.constant 0 : i32
    return %c0_i32, %c0_i32_0 : i32, i32
  }
  func.func @transform_2(%arg0: i32) -> (i32, i32) {
    %c0_i32 = arith.constant 0 : i32
    %c0_i32_0 = arith.constant 0 : i32
    %c0_i32_1 = arith.constant 0 : i32
    return %c0_i32, %c0_i32_0 : i32, i32
  }
  func.func @transform_3(%arg0: i32) -> (i32, i32) {
    %c0_i32 = arith.constant 0 : i32
    %c0_i32_0 = arith.constant 0 : i32
    %c0_i32_1 = arith.constant 0 : i32
    return %c0_i32, %c0_i32_0 : i32, i32
  }
}

</mosaic_0001>

<llo_original>
// kernel: tpu_custom_call.1
$region0: #{tpu_custom_call.1}
  #allocation0 [shape = 'u32[]', space=smem, size = 0x4, offset = 0x4, fixed_abs, tag = 'smem constant byte address 0x4 - core index']
  #allocation1 [shape = 'u32[72,128]{1,0:T(1,128)}', space=vmem, size = 0x9000, scoped, tag = 'internal scratch']
  %s0 = inlined_call_operand.vmem [shape: f32[2,784], index: 0, kind: input, shape index: {}]
  %s1 = inlined_call_operand.vmem [shape: f32[128,784], index: 1, kind: input, shape index: {}]
  %s2 = inlined_call_operand.vmem [shape: f32[1,128], index: 2, kind: input, shape index: {}]
  %s3 = inlined_call_operand.hbm [shape: f32[2,128], index: 3, kind: output, shape index: {}]
  %s4 = sld [smem:[#allocation0]]
  $region22: #{tpu_custom_call.1} parent=0
    _
  %s6 = ssub.s32 1, %s4
  %s7 = scalar_select 0, %s6, %s4
  $region1: #{tpu_custom_call.1} parent=0
    #allocation2 [shape = 'u8[1024]{0}', space=vmem, size = 0x400, scoped, tag = 'output window, operand 0, single buffered']
    #allocation3 [shape = 's32[1]{0}', space=sflag, size = 0x4, scoped, tag = 'scoped memory for tpu_custom_call.1']
    %8 = vsyncpa [#allocation3], 0
    // Predicated region
    $region2: #{tpu_custom_call.1} parent=1 // pred_check
      _
    $region3: #{tpu_custom_call.1} parent=1 // pred_check_branch
      %10 = sbr.rel (0) target = $region5
    $region4: #{tpu_custom_call.1} parent=1 // pred_region
      _
    $region5: #{tpu_custom_call.1} parent=1 // pred_fallthru
      _
    // Predicated region
    $region6: #{tpu_custom_call.1} parent=1 // pred_check
      _
    $region7: #{tpu_custom_call.1} parent=1 // pred_check_branch
      %12 = sbr.rel (0) target = $region9
    $region8: #{tpu_custom_call.1} parent=1 // pred_region
      _
    $region9: #{tpu_custom_call.1} parent=1 // pred_fallthru
      _
    // Predicated region
    $region10: #{tpu_custom_call.1} parent=1 // pred_check
      _
    $region11: #{tpu_custom_call.1} parent=1 // pred_check_branch
      %14 = sbr.rel (0) target = $region13
    $region12: #{tpu_custom_call.1} parent=1 // pred_region
      _
    $region13: #{tpu_custom_call.1} parent=1 // pred_fallthru
      _
    %v15 = vld [vmem:[%s0] sm:$0xff]
    %v16 = vld [vmem:[%s0 + $0x8] sm:$0x3f]
    %v17 = vld [vmem:[%s1] sm:$0xff]
    %v18 = vld [vmem:[%s1 + $0x8] sm:$0xff]
    %v19 = vld [vmem:[%s1 + $0x10] sm:$0xff]
    %v20 = vld [vmem:[%s1 + $0x18] sm:$0xff]
    %v21 = vld [vmem:[%s1 + $0x20] sm:$0xff]
    %v22 = vld [vmem:[%s1 + $0x28] sm:$0xff]
    %v23 = vld [vmem:[%s1 + $0x30] sm:$0xff]
    %v24 = vld [vmem:[%s1 + $0x38] sm:$0xff]
    %v25 = vld [vmem:[%s1 + $0x40] sm:$0xff]
    %v26 = vld [vmem:[%s1 + $0x48] sm:$0xff]
    %v27 = vld [vmem:[%s1 + $0x50] sm:$0xff]
    %v28 = vld [vmem:[%s1 + $0x58] sm:$0xff]
    %v29 = vld [vmem:[%s1 + $0x60] sm:$0xff]
    %v30 = vld [vmem:[%s1 + $0x68] sm:$0xff]
    %v31 = vld [vmem:[%s1 + $0x70] sm:$0xff]
    %v32 = vld [vmem:[%s1 + $0x78] sm:$0xff]
    %v33 = vld [vmem:[%s1 + $0x80] sm:$0xff]
    %v34 = vld [vmem:[%s1 + $0x88] sm:$0xff]
    %v35 = vld [vmem:[%s1 + $0x90] sm:$0xff]
    %v36 = vld [vmem:[%s1 + $0x98] sm:$0xff]
    %v37 = vld [vmem:[%s1 + $0xa0] sm:$0xff]
    %v38 = vld [vmem:[%s1 + $0xa8] sm:$0xff]
    %v39 = vld [vmem:[%s1 + $0xb0] sm:$0xff]
    %v40 = vld [vmem:[%s1 + $0xb8] sm:$0xff]
    %v41 = vld [vmem:[%s1 + $0xc0] sm:$0xff]
    %v42 = vld [vmem:[%s1 + $0xc8] sm:$0xff]
    %v43 = vld [vmem:[%s1 + $0xd0] sm:$0xff]
    %v44 = vld [vmem:[%s1 + $0xd8] sm:$0xff]
    %v45 = vld [vmem:[%s1 + $0xe0] sm:$0xff]
    %v46 = vld [vmem:[%s1 + $0xe8] sm:$0xff]
    %v47 = vld [vmem:[%s1 + $0xf0] sm:$0xff]
    %v48 = vld [vmem:[%s1 + $0xf8] sm:$0xff]
    %v49 = vld [vmem:[%s1 + $0x100] sm:$0xff]
    %v50 = vld [vmem:[%s1 + $0x108] sm:$0xff]
    %v51 = vld [vmem:[%s1 + $0x110] sm:$0xff]
    %v52 = vld [vmem:[%s1 + $0x118] sm:$0xff]
    %v53 = vld [vmem:[%s1 + $0x120] sm:$0xff]
    %v54 = vld [vmem:[%s1 + $0x128] sm:$0xff]
    %v55 = vld [vmem:[%s1 + $0x130] sm:$0xff]
    %v56 = vld [vmem:[%s1 + $0x138] sm:$0xff]
    %v57 = vld [vmem:[%s1 + $0x140] sm:$0xff]
    %v58 = vld [vmem:[%s1 + $0x148] sm:$0xff]
    %v59 = vld [vmem:[%s1 + $0x150] sm:$0xff]
    %v60 = vld [vmem:[%s1 + $0x158] sm:$0xff]
    %v61 = vld [vmem:[%s1 + $0x160] sm:$0xff]
    %v62 = vld [vmem:[%s1 + $0x168] sm:$0xff]
    %v63 = vld [vmem:[%s1 + $0x170] sm:$0xff]
    %v64 = vld [vmem:[%s1 + $0x178] sm:$0xff]
    %v65 = vld [vmem:[%s1 + $0x180] sm:$0xff]
    %v66 = vld [vmem:[%s1 + $0x188] sm:$0xff]
    %v67 = vld [vmem:[%s1 + $0x190] sm:$0xff]
    %v68 = vld [vmem:[%s1 + $0x198] sm:$0xff]
    %v69 = vld [vmem:[%s1 + $0x1a0] sm:$0xff]
    %v70 = vld [vmem:[%s1 + $0x1a8] sm:$0xff]
    %v71 = vld [vmem:[%s1 + $0x1b0] sm:$0xff]
    %v72 = vld [vmem:[%s1 + $0x1b8] sm:$0xff]
    %v73 = vld [vmem:[%s1 + $0x1c0] sm:$0xff]
    %v74 = vld [vmem:[%s1 + $0x1c8] sm:$0xff]
    %v75 = vld [vmem:[%s1 + $0x1d0] sm:$0xff]
    %v76 = vld [vmem:[%s1 + $0x1d8] sm:$0xff]
    %v77 = vld [vmem:[%s1 + $0x1e0] sm:$0xff]
    %v78 = vld [vmem:[%s1 + $0x1e8] sm:$0xff]
    %v79 = vld [vmem:[%s1 + $0x1f0] sm:$0xff]
    %v80 = vld [vmem:[%s1 + $0x1f8] sm:$0xff]
    %v81 = vld [vmem:[%s1 + $0x200] sm:$0xff]
    %v82 = vld [vmem:[%s1 + $0x208] sm:$0xff]
    %v83 = vld [vmem:[%s1 + $0x210] sm:$0xff]
    %v84 = vld [vmem:[%s1 + $0x218] sm:$0xff]
    %v85 = vld [vmem:[%s1 + $0x220] sm:$0xff]
    %v86 = vld [vmem:[%s1 + $0x228] sm:$0xff]
    %v87 = vld [vmem:[%s1 + $0x230] sm:$0xff]
    %v88 = vld [vmem:[%s1 + $0x238] sm:$0xff]
    %v89 = vld [vmem:[%s1 + $0x240] sm:$0xff]
    %v90 = vld [vmem:[%s1 + $0x248] sm:$0xff]
    %v91 = vld [vmem:[%s1 + $0x250] sm:$0xff]
    %v92 = vld [vmem:[%s1 + $0x258] sm:$0xff]
    %v93 = vld [vmem:[%s1 + $0x260] sm:$0xff]
    %v94 = vld [vmem:[%s1 + $0x268] sm:$0xff]
    %v95 = vld [vmem:[%s1 + $0x270] sm:$0xff]
    %v96 = vld [vmem:[%s1 + $0x278] sm:$0xff]
    %v97 = vld [vmem:[%s1 + $0x280] sm:$0xff]
    %v98 = vld [vmem:[%s1 + $0x288] sm:$0xff]
    %v99 = vld [vmem:[%s1 + $0x290] sm:$0xff]
    %v100 = vld [vmem:[%s1 + $0x298] sm:$0xff]
    %v101 = vld [vmem:[%s1 + $0x2a0] sm:$0xff]
    %v102 = vld [vmem:[%s1 + $0x2a8] sm:$0xff]
    %v103 = vld [vmem:[%s1 + $0x2b0] sm:$0xff]
    %v104 = vld [vmem:[%s1 + $0x2b8] sm:$0xff]
    %v105 = vld [vmem:[%s1 + $0x2c0] sm:$0xff]
    %v106 = vld [vmem:[%s1 + $0x2c8] sm:$0xff]
    %v107 = vld [vmem:[%s1 + $0x2d0] sm:$0xff]
    %v108 = vld [vmem:[%s1 + $0x2d8] sm:$0xff]
    %v109 = vld [vmem:[%s1 + $0x2e0] sm:$0xff]
    %v110 = vld [vmem:[%s1 + $0x2e8] sm:$0xff]
    %v111 = vld [vmem:[%s1 + $0x2f0] sm:$0xff]
    %v112 = vld [vmem:[%s1 + $0x2f8] sm:$0xff]
    %v113 = vld [vmem:[%s1 + $0x300] sm:$0xff]
    %v114 = vld [vmem:[%s1 + $0x308] sm:$0xff]
    %v115 = vld [vmem:[%s1 + $0x310] sm:$0xff]
    %v116 = vld [vmem:[%s1 + $0x318] sm:$0xff]
    %v117 = vld [vmem:[%s1 + $0x320] sm:$0xff]
    %v118 = vld [vmem:[%s1 + $0x328] sm:$0xff]
    %v119 = vld [vmem:[%s1 + $0x330] sm:$0xff]
    %v120 = vld [vmem:[%s1 + $0x338] sm:$0xff]
    %v121 = vld [vmem:[%s1 + $0x340] sm:$0xff]
    %v122 = vld [vmem:[%s1 + $0x348] sm:$0xff]
    %v123 = vld [vmem:[%s1 + $0x350] sm:$0xff]
    %v124 = vld [vmem:[%s1 + $0x358] sm:$0xff]
    %v125 = vld [vmem:[%s1 + $0x360] sm:$0xff]
    %v126 = vld [vmem:[%s1 + $0x368] sm:$0xff]
    %v127 = vld [vmem:[%s1 + $0x370] sm:$0xff]
    %v128 = vld [vmem:[%s1 + $0x378] sm:$0xff]
    %v129 = vld [vmem:[%s2] sm:$0x1]
    %v131 = vperm.slane %v129, 0
    %135 = vst [vmem:[#allocation1] ss:$4 sm:$0xff] %v15
    %s136 = scalar_lea.vmem [#allocation1], 32
    %137 = vst [vmem:[%s136] ss:$4 sm:$0xff] %v16
    %v138 = vld.sshfl [vmem:[#allocation1] sm:$0xff pattern:$0x73625140]
    %v139 = vld.sshfl [vmem:[#allocation1 + $0x8] sm:$0xff pattern:$0x73625140]
    %v140 = vld.sshfl [vmem:[#allocation1 + $0x10] sm:$0xff pattern:$0x73625140]
    %v141 = vld.sshfl [vmem:[#allocation1 + $0x18] sm:$0xff pattern:$0x73625140]
    %v142 = vld.sshfl [vmem:[#allocation1 + $0x20] sm:$0xff pattern:$0x73625140]
    %v143 = vld.sshfl [vmem:[#allocation1 + $0x28] sm:$0xff pattern:$0x73625140]
    %v144 = vld.sshfl [vmem:[#allocation1 + $0x30] sm:$0xff pattern:$0x73625140]
    %vm151 = vcmask 130048
    %v152 = vsel %vm151, %v144, 0
    %v155 = vsel %vm151, %v23, 0
    %v158 = vsel %vm151, %v30, 0
    %v161 = vsel %vm151, %v37, 0
    %v164 = vsel %vm151, %v44, 0
    %v167 = vsel %vm151, %v51, 0
    %v170 = vsel %vm151, %v58, 0
    %v173 = vsel %vm151, %v65, 0
    %v176 = vsel %vm151, %v72, 0
    %v179 = vsel %vm151, %v79, 0
    %v182 = vsel %vm151, %v86, 0
    %v185 = vsel %vm151, %v93, 0
    %v188 = vsel %vm151, %v100, 0
    %v191 = vsel %vm151, %v107, 0
    %v194 = vsel %vm151, %v114, 0
    %v197 = vsel %vm151, %v121, 0
    %v200 = vsel %vm151, %v128, 0
    %202 = vmatpush.xpose.msra.mxu0 %v122
    %203 = vmatpush.xpose.msra.mxu0 %v115
    %204 = vmatpush.xpose.msra.mxu0 %v108
    %205 = vmatpush.xpose.msra.mxu0 %v101
    %206 = vmatpush.xpose.msra.mxu0 %v94
    %207 = vmatpush.xpose.msra.mxu0 %v87
    %208 = vmatpush.xpose.msra.mxu0 %v80
    %209 = vmatpush.xpose.msra.mxu0 %v73
    %210 = vmatpush.xpose.msra.mxu0 %v66
    %211 = vmatpush.xpose.msra.mxu0 %v59
    %212 = vmatpush.xpose.msra.mxu0 %v52
    %213 = vmatpush.xpose.msra.mxu0 %v45
    %214 = vmatpush.xpose.msra.mxu0 %v38
    %215 = vmatpush.xpose.msra.mxu0 %v31
    %216 = vmatpush.xpose.msra.mxu0 %v24
    %217 = vmatpush.xpose.msra.mxu0 %v17
    %218 = vmatmul.f32.gmra.mxu0 %v138
    %v219 = vpop.f32.mrf.mxu0
    %v220 = vadd.f32 %v131, %v219
    %221 = vdwg.mxu0
    %222 = vmatpush.xpose.msra.mxu0 %v123
    %223 = vmatpush.xpose.msra.mxu0 %v116
    %224 = vmatpush.xpose.msra.mxu0 %v109
    %225 = vmatpush.xpose.msra.mxu0 %v102
    %226 = vmatpush.xpose.msra.mxu0 %v95
    %227 = vmatpush.xpose.msra.mxu0 %v88
    %228 = vmatpush.xpose.msra.mxu0 %v81
    %229 = vmatpush.xpose.msra.mxu0 %v74
    %230 = vmatpush.xpose.msra.mxu0 %v67
    %231 = vmatpush.xpose.msra.mxu0 %v60
    %232 = vmatpush.xpose.msra.mxu0 %v53
    %233 = vmatpush.xpose.msra.mxu0 %v46
    %234 = vmatpush.xpose.msra.mxu0 %v39
    %235 = vmatpush.xpose.msra.mxu0 %v32
    %236 = vmatpush.xpose.msra.mxu0 %v25
    %237 = vmatpush.xpose.msra.mxu0 %v18
    %238 = vmatmul.f32.gmra.mxu0 %v139
    %v239 = vpop.f32.mrf.mxu0
    %v240 = vadd.f32 %v220, %v239
    %241 = vdwg.mxu0
    %242 = vmatpush.xpose.msra.mxu0 %v124
    %243 = vmatpush.xpose.msra.mxu0 %v117
    %244 = vmatpush.xpose.msra.mxu0 %v110
    %245 = vmatpush.xpose.msra.mxu0 %v103
    %246 = vmatpush.xpose.msra.mxu0 %v96
    %247 = vmatpush.xpose.msra.mxu0 %v89
    %248 = vmatpush.xpose.msra.mxu0 %v82
    %249 = vmatpush.xpose.msra.mxu0 %v75
    %250 = vmatpush.xpose.msra.mxu0 %v68
    %251 = vmatpush.xpose.msra.mxu0 %v61
    %252 = vmatpush.xpose.msra.mxu0 %v54
    %253 = vmatpush.xpose.msra.mxu0 %v47
    %254 = vmatpush.xpose.msra.mxu0 %v40
    %255 = vmatpush.xpose.msra.mxu0 %v33
    %256 = vmatpush.xpose.msra.mxu0 %v26
    %257 = vmatpush.xpose.msra.mxu0 %v19
    %258 = vmatmul.f32.gmra.mxu0 %v140
    %v259 = vpop.f32.mrf.mxu0
    %v260 = vadd.f32 %v240, %v259
    %261 = vdwg.mxu0
    %262 = vmatpush.xpose.msra.mxu0 %v125
    %263 = vmatpush.xpose.msra.mxu0 %v118
    %264 = vmatpush.xpose.msra.mxu0 %v111
    %265 = vmatpush.xpose.msra.mxu0 %v104
    %266 = vmatpush.xpose.msra.mxu0 %v97
    %267 = vmatpush.xpose.msra.mxu0 %v90
    %268 = vmatpush.xpose.msra.mxu0 %v83
    %269 = vmatpush.xpose.msra.mxu0 %v76
    %270 = vmatpush.xpose.msra.mxu0 %v69
    %271 = vmatpush.xpose.msra.mxu0 %v62
    %272 = vmatpush.xpose.msra.mxu0 %v55
    %273 = vmatpush.xpose.msra.mxu0 %v48
    %274 = vmatpush.xpose.msra.mxu0 %v41
    %275 = vmatpush.xpose.msra.mxu0 %v34
    %276 = vmatpush.xpose.msra.mxu0 %v27
    %277 = vmatpush.xpose.msra.mxu0 %v20
    %278 = vmatmul.f32.gmra.mxu0 %v141
    %v279 = vpop.f32.mrf.mxu0
    %v280 = vadd.f32 %v260, %v279
    %281 = vdwg.mxu0
    %282 = vmatpush.xpose.msra.mxu0 %v126
    %283 = vmatpush.xpose.msra.mxu0 %v119
    %284 = vmatpush.xpose.msra.mxu0 %v112
    %285 = vmatpush.xpose.msra.mxu0 %v105
    %286 = vmatpush.xpose.msra.mxu0 %v98
    %287 = vmatpush.xpose.msra.mxu0 %v91
    %288 = vmatpush.xpose.msra.mxu0 %v84
    %289 = vmatpush.xpose.msra.mxu0 %v77
    %290 = vmatpush.xpose.msra.mxu0 %v70
    %291 = vmatpush.xpose.msra.mxu0 %v63
    %292 = vmatpush.xpose.msra.mxu0 %v56
    %293 = vmatpush.xpose.msra.mxu0 %v49
    %294 = vmatpush.xpose.msra.mxu0 %v42
    %295 = vmatpush.xpose.msra.mxu0 %v35
    %296 = vmatpush.xpose.msra.mxu0 %v28
    %297 = vmatpush.xpose.msra.mxu0 %v21
    %298 = vmatmul.f32.gmra.mxu0 %v142
    %v299 = vpop.f32.mrf.mxu0
    %v300 = vadd.f32 %v280, %v299
    %301 = vdwg.mxu0
    %302 = vmatpush.xpose.msra.mxu0 %v127
    %303 = vmatpush.xpose.msra.mxu0 %v120
    %304 = vmatpush.xpose.msra.mxu0 %v113
    %305 = vmatpush.xpose.msra.mxu0 %v106
    %306 = vmatpush.xpose.msra.mxu0 %v99
    %307 = vmatpush.xpose.msra.mxu0 %v92
    %308 = vmatpush.xpose.msra.mxu0 %v85
    %309 = vmatpush.xpose.msra.mxu0 %v78
    %310 = vmatpush.xpose.msra.mxu0 %v71
    %311 = vmatpush.xpose.msra.mxu0 %v64
    %312 = vmatpush.xpose.msra.mxu0 %v57
    %313 = vmatpush.xpose.msra.mxu0 %v50
    %314 = vmatpush.xpose.msra.mxu0 %v43
    %315 = vmatpush.xpose.msra.mxu0 %v36
    %316 = vmatpush.xpose.msra.mxu0 %v29
    %317 = vmatpush.xpose.msra.mxu0 %v22
    %318 = vmatmul.f32.gmra.mxu0 %v143
    %v319 = vpop.f32.mrf.mxu0
    %v320 = vadd.f32 %v300, %v319
    %321 = vdwg.mxu0
    %322 = vmatpush.xpose.msra.mxu0 %v200
    %323 = vmatpush.xpose.msra.mxu0 %v197
    %324 = vmatpush.xpose.msra.mxu0 %v194
    %325 = vmatpush.xpose.msra.mxu0 %v191
    %326 = vmatpush.xpose.msra.mxu0 %v188
    %327 = vmatpush.xpose.msra.mxu0 %v185
    %328 = vmatpush.xpose.msra.mxu0 %v182
    %329 = vmatpush.xpose.msra.mxu0 %v179
    %330 = vmatpush.xpose.msra.mxu0 %v176
    %331 = vmatpush.xpose.msra.mxu0 %v173
    %332 = vmatpush.xpose.msra.mxu0 %v170
    %333 = vmatpush.xpose.msra.mxu0 %v167
    %334 = vmatpush.xpose.msra.mxu0 %v164
    %335 = vmatpush.xpose.msra.mxu0 %v161
    %336 = vmatpush.xpose.msra.mxu0 %v158
    %337 = vmatpush.xpose.msra.mxu0 %v155
    %338 = vmatmul.f32.gmra.mxu0 %v152
    %v339 = vpop.f32.mrf.mxu0
    %v340 = vadd.f32 %v320, %v339
    %341 = vdwg.mxu0
    %342 = vst [vmem:[#allocation2] sm:$0x3] %v340
    // Predicated region
    $region14: #{tpu_custom_call.1} parent=1 // pred_check
      _
    $region15: #{tpu_custom_call.1} parent=1 // pred_check_branch
      %344 = sbr.rel (0) target = $region17
    $region16: #{tpu_custom_call.1} parent=1 // pred_region
      %346 = vsyncadd [#allocation3], 0
      %s348 = sshll.u32 [#allocation2], 4
      %s349 = int_to_ptr.vmem [resolvable:$true] %s348
      %s350 = sshll.u32 %s3, 4
      %s351 = int_to_ptr.hbm [resolvable:$true] %s350
      %353 = dma.vmem_to_hbm [thread:$0]  %s349, 32, %s351, [#allocation3]
    $region17: #{tpu_custom_call.1} parent=1 // pred_fallthru
      _
    // Predicated region
    $region18: #{tpu_custom_call.1} parent=1 // pred_check
      _
    $region19: #{tpu_custom_call.1} parent=1 // pred_check_branch
      %355 = sbr.rel (0) target = $region21
    $region20: #{tpu_custom_call.1} parent=1 // pred_region
      %357 = dma.done [#allocation3], 32
    $region21: #{tpu_custom_call.1} parent=1 // pred_fallthru
      _
    %358 = vsyncpa [#allocation3], 1

</llo_original>
